<compile_context>
chip_gen: v6e
topology: v6e:2x2x1
jax: 0.10.0
libtpu: 0.0.40
codegen_flags: <defaults>
</compile_context>

<pallas_src>
import math
from functools import partial

import jax
import jax.numpy as jnp
from jax import lax
from jax.scipy.special import gammaln, xlogy
from jax.experimental import pallas as pl
from jax.experimental.pallas import tpu as pltpu


def _round_up(v, m):
    return -(-v // m) * m


def _vmem_limit_bytes():
    # generation-aware budget: ~65% of physical VMEM (v5e/v6e: 128 MiB, v7x: 64 MiB)
    cap = 128 * 1024 * 1024
    try:
        cap = int(getattr(pltpu.get_tpu_info(), "vmem_capacity_bytes", cap))
    except Exception:
        pass
    return min(96 * 1024 * 1024, int(0.65 * cap))


_VMEM_LIMIT = _vmem_limit_bytes()
_ACT_DTYPE = jnp.bfloat16  # inter-kernel activation dtype


def _bf16(w):
    return w if w.dtype == jnp.bfloat16 else w.astype(jnp.bfloat16)


# ----------------------------- fused tiled matmul -----------------------------

def _matmul_kernel(x_ref, w_ref, b_ref, *rest, k_true, act, use_ln, use_res):
    idx = 0
    if use_ln:
        g_ref, beta_ref = rest[0], rest[1]
        idx = 2
    if use_res:
        r_ref = rest[idx]
        idx += 1
    o_ref = rest[idx]
    acc_ref = rest[idx + 1]

    kk = pl.program_id(2)

    @pl.when(kk == 0)
    def _():
        acc_ref[...] = jnp.zeros_like(acc_ref)

    x = x_ref[...]
    if use_ln:
        # two-pass LayerNorm prologue (contraction dim is untiled when LN is fused)
        x = x.astype(jnp.float32)
        mu = jnp.sum(x, axis=-1, keepdims=True) / k_true
        xc = x - mu
        var = jnp.sum(xc * xc, axis=-1, keepdims=True) / k_true
        x = xc * lax.rsqrt(var + 1e-5) * g_ref[...] + beta_ref[...]
    acc_ref[...] += jnp.dot(x.astype(jnp.bfloat16), w_ref[...],
                            preferred_element_type=jnp.float32)

    @pl.when(kk == pl.num_programs(2) - 1)
    def _():
        y = acc_ref[...] + b_ref[...]
        if act == "relu":
            y = jnp.maximum(y, 0.0)
        if use_res:
            y = y + r_ref[...].astype(jnp.float32)
        o_ref[...] = y.astype(o_ref.dtype)


def matmul_fused(x, w, bias=None, act=None, ln=None, residual=None, out_dtype=_ACT_DTYPE):
    """y = act(LN?(x) @ w + bias) + residual.  x:(M,K) f32/bf16, w:(K,N) bf16."""
    M, K = x.shape
    K2, N = w.shape
    assert K == K2
    use_ln, use_res = ln is not None, residual is not None

    TM = min(_round_up(M, 8), 512)
    if K <= 2048:
        TK = K
    else:
        TK = 2048 if K % 2048 == 0 else (1024 if K % 1024 == 0 else 512)
    if N <= 512:
        TN = N
    elif N % 512 == 0:
        TN = 512
    elif N % 256 == 0:
        TN = 256
    else:
        TN = 128
    Mp, Kp, Np = _round_up(M, TM), _round_up(K, TK), _round_up(N, TN)
    gm, gn, gk = Mp // TM, Np // TN, Kp // TK
    if use_ln:
        assert gk == 1, "fused LayerNorm requires an untiled contraction dim"

    xp = jnp.pad(x, ((0, Mp - M), (0, Kp - K)))
    wp = jnp.pad(_bf16(w), ((0, Kp - K), (0, Np - N)))
    bp = (jnp.zeros((1, Np), jnp.float32) if bias is None
          else jnp.pad(bias.reshape(1, N).astype(jnp.float32), ((0, 0), (0, Np - N))))

    in_specs = [pl.BlockSpec((TM, TK), lambda i, j, k: (i, k)),
                pl.BlockSpec((TK, TN), lambda i, j, k: (k, j)),
                pl.BlockSpec((1, TN), lambda i, j, k: (0, j))]
    args = [xp, wp, bp]
    if use_ln:
        g, beta = ln
        in_specs += [pl.BlockSpec((1, TK), lambda i, j, k: (0, k)),
                     pl.BlockSpec((1, TK), lambda i, j, k: (0, k))]
        args += [g.reshape(1, K).astype(jnp.float32),
                 beta.reshape(1, K).astype(jnp.float32)]
    if use_res:
        in_specs += [pl.BlockSpec((TM, TN), lambda i, j, k: (i, j))]
        args += [jnp.pad(residual, ((0, Mp - M), (0, Np - N)))]

    out = pl.pallas_call(
        partial(_matmul_kernel, k_true=float(K), act=act, use_ln=use_ln, use_res=use_res),
        out_shape=jax.ShapeDtypeStruct((Mp, Np), out_dtype),
        grid=(gm, gn, gk),
        in_specs=in_specs,
        out_specs=pl.BlockSpec((TM, TN), lambda i, j, k: (i, j)),
        scratch_shapes=[pltpu.VMEM((TM, TN), jnp.float32)],
        compiler_params=pltpu.CompilerParams(
            dimension_semantics=("parallel", "parallel", "arbitrary"),
            vmem_limit_bytes=_VMEM_LIMIT),
        cost_estimate=pl.CostEstimate(
            flops=int(2 * Mp * Kp * Np), transcendentals=0,
            bytes_accessed=int(x.dtype.itemsize * Mp * Kp + 2 * Kp * Np + 2 * Mp * Np)),
    )(*args)
    return out[:M, :N]


# ----------------------------- fused conv block -----------------------------

def _conv_kernel(*refs, K, TL, L, pad, cin, use_bn, use_res, fuse_taps):
    it = iter(refs)
    x_ref = next(it)
    halo_ref = next(it) if K > 1 else None
    w_ref = next(it)
    b_ref = next(it)
    s_ref = t_ref = None
    if use_bn:
        s_ref = next(it)
        t_ref = next(it)
    o_ref = next(it)

    x_in = x_ref[0].astype(jnp.float32)                       # (TL, Cin)
    if K > 1:
        halo = halo_ref[0, 0].astype(jnp.float32)             # (2*pad, Cin)
        win = jnp.concatenate([halo[:pad], x_in, halo[pad:]], axis=0)   # (TL+2*pad, Cin)
    else:
        win = x_in
    if use_bn:
        y = win * s_ref[...] + t_ref[...]                     # folded eval-mode BatchNorm1d
        win = jax.nn.sigmoid(1.702 * y) * y                   # Enformer GELU
    if K > 1:
        # zero conv padding / beyond-sequence rows (reference zero-pads AFTER BN+GELU)
        li = pl.program_id(2)
        g = li * TL - pad + lax.broadcasted_iota(jnp.int32, win.shape, 0)
        win = jnp.where((g >= 0) & (g < L), win, 0.0)

    if fuse_taps:
        # small-Cin path (stem): in-VMEM im2col -> one deep contraction feeds the MXU
        cols = jnp.concatenate([win[k:k + TL, :] for k in range(K)], axis=1)  # (TL, K*Cin)
        acc = jnp.dot(cols.astype(jnp.bfloat16), w_ref[...],
                      preferred_element_type=jnp.float32)
    else:
        acc = jnp.zeros(o_ref.shape[1:], jnp.float32)
        for k in range(K):
            acc = acc + jnp.dot(win[k:k + TL, :].astype(jnp.bfloat16),
                                w_ref[k * cin:(k + 1) * cin, :],
                                preferred_element_type=jnp.float32)
    out = acc + b_ref[...]
    if use_res:
        out = out + x_in                                      # 1x1 residual ConvBlock
    o_ref[0] = out.astype(o_ref.dtype)


def conv_block_fused(x, w, b, bn_scale=None, bn_shift=None, residual=False):
    """[BatchNorm+GELU ->] 'same' Conv1d (odd K) [+ residual (K==1 only)].
    x:(B,L,Cin) f32/bf16, w:(K,Cin,Cout) bf16, b:(Cout,) f32."""
    B, L, Cin = x.shape
    K, Cin2, Cout = w.shape
    assert Cin == Cin2 and K % 2 == 1
    pad = K // 2
    use_bn = bn_scale is not None
    if residual:
        assert K == 1 and Cin == Cout, "residual conv blocks are 1x1 in Enformer"

    TL = _round_up(L, 8) if L <= 256 else 256
    nL = -(-L // TL)
    Lp = nL * TL

    if K == 1 or Cout <= 512:
        TC = Cout
    elif Cout % 512 == 0:
        TC = 512
    elif Cout % 256 == 0:
        TC = 256
    else:
        TC = 512                      # pad output channels up to a multiple of 512
    nC = -(-Cout // TC)
    Coutp = nC * TC

    xp = x if Lp == L else jnp.pad(x, ((0, 0), (0, Lp - L), (0, 0)))
    w2d = _bf16(w.reshape(K * Cin, Cout))
    if Coutp != Cout:
        w2d = jnp.pad(w2d, ((0, 0), (0, Coutp - Cout)))
    bp = jnp.pad(b.reshape(1, Cout).astype(jnp.float32), ((0, 0), (0, Coutp - Cout)))

    in_specs = [pl.BlockSpec((1, TL, Cin), lambda jc, bb, i: (bb, i, 0))]
    args = [xp]
    if K > 1:
        # halo side-array: for tile i it holds rows [i*TL-pad, i*TL) ++ [(i+1)*TL, (i+1)*TL+pad)
        xr = xp.reshape(B, nL, TL, Cin)
        zeros = jnp.zeros((B, 1, pad, Cin), xp.dtype)
        left = jnp.concatenate([zeros, xr[:, :-1, TL - pad:, :]], axis=1)
        right = jnp.concatenate([xr[:, 1:, :pad, :], zeros], axis=1)
        halo = jnp.concatenate([left, right], axis=2)          # (B, nL, 2*pad, Cin)
        in_specs.append(pl.BlockSpec((1, 1, 2 * pad, Cin), lambda jc, bb, i: (bb, i, 0, 0)))
        args.append(halo)
    in_specs += [pl.BlockSpec((K * Cin, TC), lambda jc, bb, i: (0, jc)),
                 pl.BlockSpec((1, TC), lambda jc, bb, i: (0, jc))]
    args += [w2d, bp]
    if use_bn:
        in_specs += [pl.BlockSpec((1, Cin), lambda jc, bb, i: (0, 0)),
                     pl.BlockSpec((1, Cin), lambda jc, bb, i: (0, 0))]
        args += [bn_scale.reshape(1, Cin).astype(jnp.float32),
                 bn_shift.reshape(1, Cin).astype(jnp.float32)]

    fuse_taps = (K > 1) and (K * Cin <= 256)

    out = pl.pallas_call(
        partial(_conv_kernel, K=K, TL=TL, L=L, pad=pad, cin=Cin,
                use_bn=use_bn, use_res=residual, fuse_taps=fuse_taps),
        out_shape=jax.ShapeDtypeStruct((B, Lp, Coutp), _ACT_DTYPE),
        grid=(nC, B, nL),
        in_specs=in_specs,
        out_specs=pl.BlockSpec((1, TL, TC), lambda jc, bb, i: (bb, i, jc)),
        compiler_params=pltpu.CompilerParams(
            dimension_semantics=("parallel", "parallel", "parallel"),
            vmem_limit_bytes=_VMEM_LIMIT),
        cost_estimate=pl.CostEstimate(
            flops=int(2 * B * Lp * K * Cin * Coutp),
            transcendentals=int(B * Lp * Cin * (nC if use_bn else 0)),
            bytes_accessed=int(2 * B * Lp * (nC * Cin + Coutp) + 2 * K * Cin * Coutp)),
    )(*args)
    if Lp != L or Coutp != Cout:
        out = out[:, :L, :Cout]
    return out


# ----------------------------- attention pooling -----------------------------

def _attn_pool_kernel(x_ref, w_ref, o_ref):
    xall = x_ref[...]                                        # (TM, 2, C)
    x0 = xall[:, 0, :]
    x1 = xall[:, 1, :]
    l0 = jnp.dot(x0.astype(jnp.bfloat16), w_ref[...], preferred_element_type=jnp.float32)
    l1 = jnp.dot(x1.astype(jnp.bfloat16), w_ref[...], preferred_element_type=jnp.float32)
    m = jnp.maximum(l0, l1)
    e0 = jnp.exp(l0 - m)
    e1 = jnp.exp(l1 - m)
    inv = pl.reciprocal(e0 + e1, approx=True)
    o_ref[...] = ((x0.astype(jnp.float32) * e0 + x1.astype(jnp.float32) * e1) * inv
                  ).astype(o_ref.dtype)


def attention_pool(x, w_pool):
    """AttentionPool with pool_size=2.  x: (B, L, C) -> (B, L//2, C)."""
    B, L, C = x.shape
    assert L % 2 == 0  # TODO(synk): padding+mask branch of AttentionPool is not exercised here
    M = B * (L // 2)
    TM = min(_round_up(M, 8), 512)
    Mp = _round_up(M, TM)
    xr = x.reshape(M, 2, C)
    if Mp != M:
        xr = jnp.pad(xr, ((0, Mp - M), (0, 0), (0, 0)))
    out = pl.pallas_call(
        _attn_pool_kernel,
        out_shape=jax.ShapeDtypeStruct((Mp, C), _ACT_DTYPE),
        grid=(Mp // TM,),
        in_specs=[pl.BlockSpec((TM, 2, C), lambda i: (i, 0, 0)),
                  pl.BlockSpec((C, C), lambda i: (0, 0))],
        out_specs=pl.BlockSpec((TM, C), lambda i: (i, 0)),
        compiler_params=pltpu.CompilerParams(dimension_semantics=("parallel",),
                                             vmem_limit_bytes=_VMEM_LIMIT),
    )(xr, _bf16(w_pool))
    return out[:M].reshape(B, L // 2, C)


# ----------------------------- fused attention (q-block tiled) -----------------------------

def _rotate_left(x, s):
    """Left-rotate lanes by s.  Uses the XLU (pltpu.roll) when lane width is 128-aligned;
    falls back to a concatenate for tiny (toy-size) widths."""
    w = x.shape[-1]
    if w % 128 == 0:
        return pltpu.roll(x, shift=w - s, axis=-1)     # np.roll semantics
    return jnp.concatenate([x[:, s:], x[:, :s]], axis=-1)


def _rel_shift(rel, tq):
    """rel: (TQ, W).  Returns shifted with shifted[i, j] = rel[i, j + tq - 1 - i], built from
    log2(TQ) conditional uniform lane rotations (no gathers, no HBM traffic)."""
    rows = lax.broadcasted_iota(jnp.int32, rel.shape, 0)
    amt = (tq - 1) - rows
    out = rel
    s = 1
    while s < tq:
        out = jnp.where((amt & s) != 0, _rotate_left(out, s), out)
        s *= 2
    return out


def _attn_kernel(q_ref, k_ref, v_ref, rk_ref, cb_ref, pb_ref, o_ref, *, n, tq, scale):
    qi = pl.program_id(2)
    q = q_ref[0, 0].astype(jnp.float32) * scale              # (TQ, dk)
    qc = (q + cb_ref[0]).astype(jnp.bfloat16)
    qp = (q + pb_ref[0]).astype(jnp.bfloat16)
    nt = (((1,), (1,)), ((), ()))                            # contract on the trailing dim
    content = lax.dot_general(qc, k_ref[0, 0], nt,
                              preferred_element_type=jnp.float32)       # (TQ, N)
    # only the (N+TQ)-row rel_k window this q-block can reference
    start = pl.multiple_of(n - tq * (qi + 1), 8)
    rk_win = rk_ref[0, pl.ds(start, n + tq), :]                          # (N+TQ, dk)
    rel = lax.dot_general(qp, rk_win, nt, preferred_element_type=jnp.float32)  # (TQ, N+TQ)
    logits = content + _rel_shift(rel, tq)[:, :n]
    m = jnp.max(logits, axis=-1, keepdims=True)
    e = jnp.exp(logits - m)
    p = e * pl.reciprocal(jnp.sum(e, axis=-1, keepdims=True), approx=True)
    o_ref[0, 0] = jnp.dot(p.astype(jnp.bfloat16), v_ref[0, 0],
                          preferred_element_type=jnp.float32).astype(o_ref.dtype)


def attention_core(q, k, v, rel_k, content_bias, pos_bias, scale):
    """q,k: (B,h,N,dk)  v: (B,h,N,dv)  rel_k: (h,2N,dk) (last row zero pad) -> (B,h,N,dv)."""
    B, h, N, dk = q.shape
    dv = v.shape[-1]
    if N <= 256:
        TQ = N
    elif N % 256 == 0:
        TQ = 256
    elif N % 128 == 0:
        TQ = 128
    else:
        TQ = N
    nQ = N // TQ
    return pl.pallas_call(
        partial(_attn_kernel, n=N, tq=TQ, scale=scale),
        out_shape=jax.ShapeDtypeStruct((B, h, N, dv), _ACT_DTYPE),
        grid=(B, h, nQ),
        in_specs=[pl.BlockSpec((1, 1, TQ, dk), lambda b, hh, qi: (b, hh, qi, 0)),
                  pl.BlockSpec((1, 1, N, dk), lambda b, hh, qi: (b, hh, 0, 0)),
                  pl.BlockSpec((1, 1, N, dv), lambda b, hh, qi: (b, hh, 0, 0)),
                  pl.BlockSpec((1, 2 * N, dk), lambda b, hh, qi: (hh, 0, 0)),
                  pl.BlockSpec((1, 1, dk), lambda b, hh, qi: (hh, 0, 0)),
                  pl.BlockSpec((1, 1, dk), lambda b, hh, qi: (hh, 0, 0))],
        out_specs=pl.BlockSpec((1, 1, TQ, dv), lambda b, hh, qi: (b, hh, qi, 0)),
        compiler_params=pltpu.CompilerParams(
            dimension_semantics=("parallel", "parallel", "parallel"),
            vmem_limit_bytes=_VMEM_LIMIT),
        cost_estimate=pl.CostEstimate(
            flops=int(2 * B * h * N * ((2 * N + TQ) * dk + N * dv)),
            transcendentals=int(B * h * N * N),
            bytes_accessed=int(2 * B * h * N * (2 * dk + 2 * dv) + 2 * h * 2 * N * dk)),
    )(q, k, v, rel_k, content_bias.reshape(h, 1, dk).astype(jnp.float32),
      pos_bias.reshape(h, 1, dk).astype(jnp.float32))


def attention_block(x, pos_emb, lyr, cfg):
    """Residual(LayerNorm -> Attention) with LN fused into the QKV projection and the residual
    fused into the output projection.
    TODO(synk): direct q/k/v BlockSpec slicing of the fused qkv tensor would remove the
    transposes below but needs 128-aligned per-head lane blocks (dk=64 / dv=192 are not)."""
    B, N, D = x.shape
    h, dk, dv = cfg["heads"], cfg["dim_key"], cfg["dim_value"]
    ap = lyr["attn"]
    xf = x.reshape(B * N, D)

    qkv = matmul_fused(xf, ap["w_qkv"], ln=(lyr["ln1_g"], lyr["ln1_b"]))    # (B*N, h*(2dk+dv))
    q = qkv[:, :h * dk].reshape(B, N, h, dk).transpose(0, 2, 1, 3)
    k = qkv[:, h * dk:2 * h * dk].reshape(B, N, h, dk).transpose(0, 2, 1, 3)
    v = qkv[:, 2 * h * dk:].reshape(B, N, h, dv).transpose(0, 2, 1, 3)

    rel_k = matmul_fused(pos_emb, ap["w_rel_k"])                            # (2N-1, h*dk)
    rel_k = rel_k.reshape(2 * N - 1, h, dk).transpose(1, 0, 2)              # (h, 2N-1, dk)
    rel_k = jnp.pad(rel_k, ((0, 0), (0, 1), (0, 0)))                        # zero row -> (h,2N,dk)

    out = attention_core(q, k, v, rel_k, ap["rel_content_bias"], ap["rel_pos_bias"],
                         float(dk) ** -0.5)                                 # (B, h, N, dv)
    out = out.transpose(0, 2, 1, 3).reshape(B * N, h * dv)
    out = matmul_fused(out, ap["w_out"], ap["b_out"], residual=xf)          # residual fused
    return out.reshape(B, N, D)


# ----------------------------- fused feed-forward -----------------------------

def _ffn_kernel(x_ref, g_ref, b_ref, w1_ref, b1_ref, w2_ref, b2_ref, o_ref,
                xn_ref, acc_ref, *, d_true):
    kk = pl.program_id(1)

    @pl.when(kk == 0)
    def _():
        x = x_ref[...].astype(jnp.float32)
        mu = jnp.sum(x, axis=-1, keepdims=True) / d_true
        xc = x - mu
        var = jnp.sum(xc * xc, axis=-1, keepdims=True) / d_true
        xn = xc * lax.rsqrt(var + 1e-5) * g_ref[...] + b_ref[...]
        xn_ref[...] = xn.astype(jnp.bfloat16)
        acc_ref[...] = jnp.zeros_like(acc_ref)

    hdn = jnp.dot(xn_ref[...], w1_ref[...], preferred_element_type=jnp.float32) + b1_ref[...]
    hdn = jnp.maximum(hdn, 0.0).astype(jnp.bfloat16)          # hidden stays in VMEM, bf16
    acc_ref[...] += jnp.dot(hdn, w2_ref[...], preferred_element_type=jnp.float32)

    @pl.when(kk == pl.num_programs(1) - 1)
    def _():
        y = acc_ref[...] + b2_ref[...] + x_ref[...].astype(jnp.float32)
        o_ref[...] = y.astype(o_ref.dtype)


def ffn_block(x, lyr):
    """Residual(LayerNorm -> Linear -> ReLU -> Linear); hidden dim tiled over the grid so the
    big weights are never fully resident in VMEM."""
    B, N, D = x.shape
    H = lyr["w1"].shape[1]
    M = B * N
    TM = min(_round_up(M, 8), 512)
    Mp = _round_up(M, TM)
    TH = H if H <= 512 else 512
    assert H % TH == 0
    xf = x.reshape(M, D)
    if Mp != M:
        xf = jnp.pad(xf, ((0, Mp - M), (0, 0)))
    out = pl.pallas_call(
        partial(_ffn_kernel, d_true=float(D)),
        out_shape=jax.ShapeDtypeStruct((Mp, D), _ACT_DTYPE),
        grid=(Mp // TM, H // TH),
        in_specs=[pl.BlockSpec((TM, D), lambda i, k: (i, 0)),
                  pl.BlockSpec((1, D), lambda i, k: (0, 0)),
                  pl.BlockSpec((1, D), lambda i, k: (0, 0)),
                  pl.BlockSpec((D, TH), lambda i, k: (0, k)),
                  pl.BlockSpec((1, TH), lambda i, k: (0, k)),
                  pl.BlockSpec((TH, D), lambda i, k: (k, 0)),
                  pl.BlockSpec((1, D), lambda i, k: (0, 0))],
        out_specs=pl.BlockSpec((TM, D), lambda i, k: (i, 0)),
        scratch_shapes=[pltpu.VMEM((TM, D), jnp.bfloat16),
                        pltpu.VMEM((TM, D), jnp.float32)],
        compiler_params=pltpu.CompilerParams(
            dimension_semantics=("parallel", "arbitrary"),
            vmem_limit_bytes=_VMEM_LIMIT),
        cost_estimate=pl.CostEstimate(flops=int(4 * Mp * D * H), transcendentals=0,
                                      bytes_accessed=int(4 * Mp * D + 4 * D * H)),
    )(xf, lyr["ln2_g"].reshape(1, D), lyr["ln2_b"].reshape(1, D),
      lyr["w1"], lyr["b1"].reshape(1, H), lyr["w2"], lyr["b2"].reshape(1, D))
    return out[:M].reshape(B, N, D)


# ----------------------------- plain-JAX glue -----------------------------

def exponential_linspace_int(start, end, num, divisible_by=1):
    def _round(v):
        return int(round(v / divisible_by) * divisible_by)
    base = math.exp(math.log(end / start) / (num - 1))
    return [_round(start * base ** i) for i in range(num)]


def get_positional_embed(seq_len, feature_size):
    if feature_size % 6 != 0:
        raise ValueError("feature size is not divisible by number of components (6)")
    nb = feature_size // 6
    distances = jnp.arange(-seq_len + 1, seq_len).astype(jnp.float32)
    absd = jnp.abs(distances)[:, None]
    max_range = math.log(seq_len) / math.log(2.0)
    half_life = 2.0 ** jnp.linspace(3.0, max_range, nb)
    exp_emb = jnp.exp(-math.log(2.0) / half_life[None, :] * absd)
    center_widths = 2.0 ** jnp.arange(1, nb + 1, dtype=jnp.float32) - 1.0
    cm_emb = (center_widths[None, :] > absd).astype(jnp.float32)
    stddev = seq_len / (2 * nb)
    start_mean = seq_len / nb
    mean = jnp.linspace(start_mean, float(seq_len), nb)
    concentration = (mean / stddev) ** 2
    rate = mean / stddev ** 2
    log_unnorm = xlogy(concentration - 1.0, absd) - rate * absd
    log_norm = gammaln(concentration) - concentration * jnp.log(rate)
    probs = jnp.exp(log_unnorm - log_norm) + 1e-8
    gamma_emb = probs / jnp.max(probs, axis=-1, keepdims=True)
    emb = jnp.concatenate([exp_emb, cm_emb, gamma_emb], axis=-1)
    emb = jnp.concatenate([emb, jnp.sign(distances)[:, None] * emb], axis=-1)
    return emb.astype(jnp.float32)


def enformer2_forward(x, params, cfg):
    """x: (B, N, 4) one-hot sequence, channels-last.  Returns transformer-trunk embeddings."""
    p = params
    # stem: Conv1d(4, half_dim, 15) -> Residual(ConvBlock k=1) -> AttentionPool(2)
    x = conv_block_fused(x, p["stem"]["conv_w"], p["stem"]["conv_b"])
    rb = p["stem"]["res_block"]
    x = conv_block_fused(x, rb["conv_w"], rb["conv_b"], rb["bn_scale"], rb["bn_shift"],
                         residual=True)
    x = attention_pool(x, p["stem"]["pool_w"])
    # conv tower
    for lyr in p["tower"]:
        blk = lyr["block"]
        x = conv_block_fused(x, blk["conv_w"], blk["conv_b"], blk["bn_scale"], blk["bn_shift"])
        rb = lyr["res_block"]
        x = conv_block_fused(x, rb["conv_w"], rb["conv_b"], rb["bn_scale"], rb["bn_shift"],
                             residual=True)
        x = attention_pool(x, lyr["pool_w"])
    # transformer (Dropout layers are identity at inference); pos embedding hoisted once
    B, N, D = x.shape
    pos_emb = get_positional_embed(N, cfg["num_rel_pos_features"])
    for lyr in p["transformer"]:
        x = attention_block(x, pos_emb, lyr, cfg)
        x = ffn_block(x, lyr)
    return x


# ----------------------------- reference attention (self-check) -----------------------------

def _attention_reference(q, k, v, rel_k, cb, pb, scale):
    """Pure-JAX reference matching the PyTorch Attention math (incl. relative_shift)."""
    q = q.astype(jnp.float32) * scale
    k = k.astype(jnp.float32)
    v = v.astype(jnp.float32)
    content = jnp.einsum('bhid,bhjd->bhij', q + cb[None, :, None, :], k)
    rel = jnp.einsum('bhid,hjd->bhij', q + pb[None, :, None, :], rel_k.astype(jnp.float32))
    n = q.shape[2]
    idx = jnp.arange(n)[None, :] + (n - 1) - jnp.arange(n)[:, None]       # (n, n)
    idx = jnp.broadcast_to(idx[None, None], rel.shape[:2] + (n, n))
    rel_shifted = jnp.take_along_axis(rel, idx, axis=-1)
    attn = jax.nn.softmax(content + rel_shifted, axis=-1)
    return jnp.einsum('bhij,bhjd->bhid', attn, v)


# ----------------------------- parameter setup -----------------------------

def _bn_folded(c):
    # fresh BatchNorm1d (eval): weight=1, bias=0, running_mean=0, running_var=1, eps=1e-5
    weight = jnp.ones((c,), jnp.float32)
    bias = jnp.zeros((c,), jnp.float32)
    mean = jnp.zeros((c,), jnp.float32)
    var = jnp.ones((c,), jnp.float32)
    scale = weight / jnp.sqrt(var + 1e-5)
    shift = bias - mean * scale
    return scale, shift


def build_params(key, cfg):
    dim, half_dim = cfg["dim"], cfg["half_dim"]
    heads, dk, dv = cfg["heads"], cfg["dim_key"], cfg["dim_value"]
    nrpf = cfg["num_rel_pos_features"]
    keys = iter(jax.random.split(key, 512))

    def rand(shape, scale=0.05, dtype=jnp.float32):
        return (jax.random.normal(next(keys), shape, jnp.float32) * scale).astype(dtype)

    def conv_block_params(cin, cout, ksize):
        bn_scale, bn_shift = _bn_folded(cin)
        return dict(bn_scale=bn_scale, bn_shift=bn_shift,
                    conv_w=rand((ksize, cin, cout), dtype=jnp.bfloat16),
                    conv_b=rand((cout,), 0.01))

    params = {}
    params["stem"] = dict(
        conv_w=rand((15, 4, half_dim), dtype=jnp.bfloat16), conv_b=rand((half_dim,), 0.01),
        res_block=conv_block_params(half_dim, half_dim, 1),
        pool_w=(2.0 * jnp.eye(half_dim)).astype(jnp.bfloat16),   # dirac-init 1x1 conv * 2
    )

    filter_list = exponential_linspace_int(half_dim, dim, num=cfg["num_downsamples"] - 1,
                                           divisible_by=cfg["dim_divisible_by"])
    filter_list = [half_dim, *filter_list]
    tower = []
    for din, dout in zip(filter_list[:-1], filter_list[1:]):
        tower.append(dict(
            block=conv_block_params(din, dout, 5),
            res_block=conv_block_params(dout, dout, 1),
            pool_w=(2.0 * jnp.eye(dout)).astype(jnp.bfloat16),
        ))
    params["tower"] = tower

    tlayers = []
    for _ in range(cfg["depth"]):
        attn_p = dict(
            w_qkv=jnp.concatenate([rand((dim, heads * dk), dtype=jnp.bfloat16),
                                   rand((dim, heads * dk), dtype=jnp.bfloat16),
                                   rand((dim, heads * dv), dtype=jnp.bfloat16)], axis=1),
            w_rel_k=rand((nrpf, heads * dk), dtype=jnp.bfloat16),
            rel_content_bias=rand((heads, dk), 1.0),
            rel_pos_bias=rand((heads, dk), 1.0),
            # reference zero-inits to_out; small deterministic values so the path is exercised
            w_out=rand((heads * dv, dim), dtype=jnp.bfloat16), b_out=rand((dim,), 0.01),
        )
        tlayers.append(dict(
            ln1_g=jnp.ones((dim,), jnp.float32), ln1_b=jnp.zeros((dim,), jnp.float32),
            attn=attn_p,
            ln2_g=jnp.ones((dim,), jnp.float32), ln2_b=jnp.zeros((dim,), jnp.float32),
            w1=rand((dim, dim * 2), dtype=jnp.bfloat16), b1=rand((dim * 2,), 0.01),
            w2=rand((dim * 2, dim), dtype=jnp.bfloat16), b2=rand((dim,), 0.01),
        ))
    params["transformer"] = tlayers
    return params


# ----------------------------- main -----------------------------

if __name__ == "__main__":
    # small config consistent with Enformer2's structure (reference: dim=1536, depth=11,
    # heads=8, num_downsamples=7) scaled down so the script runs quickly on one TPU core.
    cfg = dict(dim=48, half_dim=24, depth=2, heads=4, dim_key=8,
               num_downsamples=3, dim_divisible_by=8)
    cfg["dim_value"] = cfg["dim"] // cfg["heads"]
    cfg["num_rel_pos_features"] = cfg["dim"] // cfg["heads"]  # must be divisible by 6

    key = jax.random.PRNGKey(0)
    pkey, dkey = jax.random.split(key)
    params = build_params(pkey, cfg)

    # self-check: fused q-tiled attention kernel (incl. in-kernel relative shift) vs pure JAX
    Bc, hc, Nc, dkc, dvc = 1, 2, 16, 8, 8
    cks = jax.random.split(jax.random.PRNGKey(1), 6)
    qc = (jax.random.normal(cks[0], (Bc, hc, Nc, dkc)) * 0.5).astype(jnp.bfloat16)
    kc = (jax.random.normal(cks[1], (Bc, hc, Nc, dkc)) * 0.5).astype(jnp.bfloat16)
    vc = (jax.random.normal(cks[2], (Bc, hc, Nc, dvc)) * 0.5).astype(jnp.bfloat16)
    rkc = (jax.random.normal(cks[3], (hc, 2 * Nc - 1, dkc)) * 0.5).astype(jnp.bfloat16)
    cbc = jax.random.normal(cks[4], (hc, dkc), jnp.float32) * 0.5
    pbc = jax.random.normal(cks[5], (hc, dkc), jnp.float32) * 0.5
    got = attention_core(qc, kc, vc, jnp.pad(rkc, ((0, 0), (0, 1), (0, 0))),
                         cbc, pbc, float(dkc) ** -0.5)
    want = _attention_reference(qc, kc, vc, rkc, cbc, pbc, float(dkc) ** -0.5)
    assert bool(jnp.allclose(got.astype(jnp.float32), want, atol=3e-2)), \
        "attention self-check failed"

    B, N = 2, 64  # N must be divisible by 2**num_downsamples
    idx = jax.random.randint(dkey, (B, N), 0, 4)
    x = jax.nn.one_hot(idx, 4, dtype=jnp.float32)  # (B, N, 4), like seq_indices_to_one_hot

    fwd = jax.jit(partial(enformer2_forward, cfg=cfg))
    out = jax.block_until_ready(fwd(x, params))

    expected_n = N // (2 ** cfg["num_downsamples"])
    assert out.shape == (B, expected_n, cfg["dim"]), out.shape
    assert bool(jnp.all(jnp.isfinite(out.astype(jnp.float32))))
    print("KERNEL_OK")
</pallas_src>

<mosaic_0001>
module attributes {stable_mosaic.version = 11 : i64} {
  func.func @_attn_kernel(%arg0: i32, %arg1: i32, %arg2: i32, %arg3: memref<1x1x16x8xbf16, #tpu.memory_space<vmem>>, %arg4: memref<1x1x16x8xbf16, #tpu.memory_space<vmem>>, %arg5: memref<1x1x16x8xbf16, #tpu.memory_space<vmem>>, %arg6: memref<1x32x8xbf16, #tpu.memory_space<vmem>>, %arg7: memref<1x1x8xf32, #tpu.memory_space<vmem>>, %arg8: memref<1x1x8xf32, #tpu.memory_space<vmem>>, %arg9: memref<1x1x16x8xbf16, #tpu.memory_space<vmem>>) attributes {dimension_semantics = [#tpu.dimension_semantics<parallel>, #tpu.dimension_semantics<parallel>, #tpu.dimension_semantics<parallel>], iteration_bounds = array<i64: 1, 2, 1>, scalar_prefetch = 0 : i64, scratch_operands = 0 : i64, tpu.core_type = #tpu.core_type<tc>, window_params = [{transform_indices = @transform_0, window_bounds = array<i64: 1, 1, 16, 8>}, {transform_indices = @transform_1, window_bounds = array<i64: 1, 1, 16, 8>}, {transform_indices = @transform_2, window_bounds = array<i64: 1, 1, 16, 8>}, {transform_indices = @transform_3, window_bounds = array<i64: 1, 32, 8>}, {transform_indices = @transform_4, window_bounds = array<i64: 1, 1, 8>}, {transform_indices = @transform_5, window_bounds = array<i64: 1, 1, 8>}, {transform_indices = @transform_6, window_bounds = array<i64: 1, 1, 16, 8>}]} {
    %c0 = arith.constant 0 : index
    %c0_0 = arith.constant 0 : index
    %c0_1 = arith.constant 0 : index
    %c0_2 = arith.constant 0 : index
    %0 = vector.load %arg3[%c0, %c0_0, %c0_1, %c0_2] : memref<1x1x16x8xbf16, #tpu.memory_space<vmem>>, vector<1x1x16x8xbf16>
    %1 = vector.shape_cast %0 : vector<1x1x16x8xbf16> to vector<16x8xbf16>
    %2 = arith.extf %1 : vector<16x8xbf16> to vector<16x8xf32>
    %cst = arith.constant 0.353553385 : f32
    %3 = vector.broadcast %cst : f32 to vector<16x8xf32>
    %4 = arith.mulf %2, %3 : vector<16x8xf32>
    %c0_3 = arith.constant 0 : index
    %c0_4 = arith.constant 0 : index
    %c0_5 = arith.constant 0 : index
    %5 = vector.load %arg7[%c0_3, %c0_4, %c0_5] : memref<1x1x8xf32, #tpu.memory_space<vmem>>, vector<1x1x8xf32>
    %6 = vector.shape_cast %5 : vector<1x1x8xf32> to vector<1x8xf32>
    %7 = vector.broadcast %6 : vector<1x8xf32> to vector<16x8xf32>
    %8 = arith.addf %4, %7 : vector<16x8xf32>
    %9 = arith.truncf %8 : vector<16x8xf32> to vector<16x8xbf16>
    %c0_6 = arith.constant 0 : index
    %c0_7 = arith.constant 0 : index
    %c0_8 = arith.constant 0 : index
    %10 = vector.load %arg8[%c0_6, %c0_7, %c0_8] : memref<1x1x8xf32, #tpu.memory_space<vmem>>, vector<1x1x8xf32>
    %11 = vector.shape_cast %10 : vector<1x1x8xf32> to vector<1x8xf32>
    %12 = vector.broadcast %11 : vector<1x8xf32> to vector<16x8xf32>
    %13 = arith.addf %4, %12 : vector<16x8xf32>
    %14 = arith.truncf %13 : vector<16x8xf32> to vector<16x8xbf16>
    %c0_9 = arith.constant 0 : index
    %c0_10 = arith.constant 0 : index
    %c0_11 = arith.constant 0 : index
    %c0_12 = arith.constant 0 : index
    %15 = vector.load %arg4[%c0_9, %c0_10, %c0_11, %c0_12] : memref<1x1x16x8xbf16, #tpu.memory_space<vmem>>, vector<1x1x16x8xbf16>
    %16 = vector.shape_cast %15 : vector<1x1x16x8xbf16> to vector<16x8xbf16>
    %cst_13 = arith.constant dense<0.000000e+00> : vector<16x16xf32>
    %17 = tpu.matmul %9, %16, %cst_13 {dimension_numbers = #tpu.dot_dimension_numbers<[1], [1], [0], [0], [0, 0, 1, 0], [], []>} : vector<16x8xbf16>, vector<16x8xbf16>, vector<16x16xf32> -> vector<16x16xf32>
    %c1_i32 = arith.constant 1 : i32
    %18 = arith.addi %arg2, %c1_i32 : i32
    %c16_i32 = arith.constant 16 : i32
    %19 = arith.muli %c16_i32, %18 : i32
    %c16_i32_14 = arith.constant 16 : i32
    %20 = arith.subi %c16_i32_14, %19 : i32
    %21 = tpu.assume_multiple %20, 8 : i32
    %c0_15 = arith.constant 0 : index
    %22 = arith.index_cast %21 : i32 to index
    %c0_16 = arith.constant 0 : index
    %23 = vector.load %arg6[%c0_15, %22, %c0_16] : memref<1x32x8xbf16, #tpu.memory_space<vmem>>, vector<1x32x8xbf16>
    %24 = vector.shape_cast %23 : vector<1x32x8xbf16> to vector<32x8xbf16>
    %cst_17 = arith.constant dense<0.000000e+00> : vector<16x32xf32>
    %25 = tpu.matmul %14, %24, %cst_17 {dimension_numbers = #tpu.dot_dimension_numbers<[1], [1], [0], [0], [0, 0, 1, 0], [], []>} : vector<16x8xbf16>, vector<32x8xbf16>, vector<16x32xf32> -> vector<16x32xf32>
    %26 = tpu.iota {dimensions = array<i32: 0>} : vector<16x32xi32>
    %c15_i32 = arith.constant 15 : i32
    %27 = vector.broadcast %c15_i32 : i32 to vector<16x32xi32>
    %28 = arith.subi %27, %26 : vector<16x32xi32>
    %c1_i32_18 = arith.constant 1 : i32
    %29 = vector.broadcast %c1_i32_18 : i32 to vector<16x32xi32>
    %30 = arith.andi %28, %29 : vector<16x32xi32>
    %c0_i32 = arith.constant 0 : i32
    %31 = vector.broadcast %c0_i32 : i32 to vector<16x32xi32>
    %32 = arith.cmpi ne, %30, %31 : vector<16x32xi32>
    %33 = vector.extract_strided_slice %25 {offsets = [0, 1], sizes = [16, 31], strides = [1, 1]} : vector<16x32xf32> to vector<16x31xf32>
    %34 = vector.extract_strided_slice %25 {offsets = [0, 0], sizes = [16, 1], strides = [1, 1]} : vector<16x32xf32> to vector<16x1xf32>
    %35 = tpu.concatenate %33, %34 in 1 : vector<16x31xf32>, vector<16x1xf32> -> vector<16x32xf32>
    %36 = arith.select %32, %35, %25 : vector<16x32xi1>, vector<16x32xf32>
    %c2_i32 = arith.constant 2 : i32
    %37 = vector.broadcast %c2_i32 : i32 to vector<16x32xi32>
    %38 = arith.andi %28, %37 : vector<16x32xi32>
    %c0_i32_19 = arith.constant 0 : i32
    %39 = vector.broadcast %c0_i32_19 : i32 to vector<16x32xi32>
    %40 = arith.cmpi ne, %38, %39 : vector<16x32xi32>
    %41 = vector.extract_strided_slice %36 {offsets = [0, 2], sizes = [16, 30], strides = [1, 1]} : vector<16x32xf32> to vector<16x30xf32>
    %42 = vector.extract_strided_slice %36 {offsets = [0, 0], sizes = [16, 2], strides = [1, 1]} : vector<16x32xf32> to vector<16x2xf32>
    %43 = tpu.concatenate %41, %42 in 1 : vector<16x30xf32>, vector<16x2xf32> -> vector<16x32xf32>
    %44 = arith.select %40, %43, %36 : vector<16x32xi1>, vector<16x32xf32>
    %c4_i32 = arith.constant 4 : i32
    %45 = vector.broadcast %c4_i32 : i32 to vector<16x32xi32>
    %46 = arith.andi %28, %45 : vector<16x32xi32>
    %c0_i32_20 = arith.constant 0 : i32
    %47 = vector.broadcast %c0_i32_20 : i32 to vector<16x32xi32>
    %48 = arith.cmpi ne, %46, %47 : vector<16x32xi32>
    %49 = vector.extract_strided_slice %44 {offsets = [0, 4], sizes = [16, 28], strides = [1, 1]} : vector<16x32xf32> to vector<16x28xf32>
    %50 = vector.extract_strided_slice %44 {offsets = [0, 0], sizes = [16, 4], strides = [1, 1]} : vector<16x32xf32> to vector<16x4xf32>
    %51 = tpu.concatenate %49, %50 in 1 : vector<16x28xf32>, vector<16x4xf32> -> vector<16x32xf32>
    %52 = arith.select %48, %51, %44 : vector<16x32xi1>, vector<16x32xf32>
    %c8_i32 = arith.constant 8 : i32
    %53 = vector.broadcast %c8_i32 : i32 to vector<16x32xi32>
    %54 = arith.andi %28, %53 : vector<16x32xi32>
    %c0_i32_21 = arith.constant 0 : i32
    %55 = vector.broadcast %c0_i32_21 : i32 to vector<16x32xi32>
    %56 = arith.cmpi ne, %54, %55 : vector<16x32xi32>
    %57 = vector.extract_strided_slice %52 {offsets = [0, 8], sizes = [16, 24], strides = [1, 1]} : vector<16x32xf32> to vector<16x24xf32>
    %58 = vector.extract_strided_slice %52 {offsets = [0, 0], sizes = [16, 8], strides = [1, 1]} : vector<16x32xf32> to vector<16x8xf32>
    %59 = tpu.concatenate %57, %58 in 1 : vector<16x24xf32>, vector<16x8xf32> -> vector<16x32xf32>
    %60 = arith.select %56, %59, %52 : vector<16x32xi1>, vector<16x32xf32>
    %61 = vector.extract_strided_slice %60 {offsets = [0, 0], sizes = [16, 16], strides = [1, 1]} : vector<16x32xf32> to vector<16x16xf32>
    %62 = arith.addf %17, %61 : vector<16x16xf32>
    %cst_22 = arith.constant dense<0xFF800000> : vector<16xf32>
    %63 = vector.multi_reduction <maximumf>, %62, %cst_22 [1] : vector<16x16xf32> to vector<16xf32>
    %64 = vector.shape_cast %63 : vector<16xf32> to vector<16x1xf32>
    %65 = vector.broadcast %64 : vector<16x1xf32> to vector<16x16xf32>
    %66 = arith.subf %62, %65 : vector<16x16xf32>
    %67 = math.exp %66 : vector<16x16xf32>
    %cst_23 = arith.constant dense<0.000000e+00> : vector<16xf32>
    %68 = vector.multi_reduction <add>, %67, %cst_23 [1] : vector<16x16xf32> to vector<16xf32>
    %69 = vector.shape_cast %68 : vector<16xf32> to vector<16x1xf32>
    %70 = tpu.reciprocal %69 {approx = true} : vector<16x1xf32> -> vector<16x1xf32>
    %71 = vector.broadcast %70 : vector<16x1xf32> to vector<16x16xf32>
    %72 = arith.mulf %67, %71 : vector<16x16xf32>
    %73 = arith.truncf %72 : vector<16x16xf32> to vector<16x16xbf16>
    %c0_24 = arith.constant 0 : index
    %c0_25 = arith.constant 0 : index
    %c0_26 = arith.constant 0 : index
    %c0_27 = arith.constant 0 : index
    %74 = vector.load %arg5[%c0_24, %c0_25, %c0_26, %c0_27] : memref<1x1x16x8xbf16, #tpu.memory_space<vmem>>, vector<1x1x16x8xbf16>
    %75 = vector.shape_cast %74 : vector<1x1x16x8xbf16> to vector<16x8xbf16>
    %cst_28 = arith.constant dense<0.000000e+00> : vector<16x8xf32>
    %76 = tpu.matmul %73, %75, %cst_28 {dimension_numbers = #tpu.dot_dimension_numbers<[1], [0], [0], [1], [0, 0, 1, 1], [], []>} : vector<16x16xbf16>, vector<16x8xbf16>, vector<16x8xf32> -> vector<16x8xf32>
    %77 = arith.truncf %76 : vector<16x8xf32> to vector<16x8xbf16>
    %c0_29 = arith.constant 0 : index
    %c0_30 = arith.constant 0 : index
    %c0_31 = arith.constant 0 : index
    %c0_32 = arith.constant 0 : index
    %78 = vector.load %arg9[%c0_29, %c0_30, %c0_31, %c0_32] : memref<1x1x16x8xbf16, #tpu.memory_space<vmem>>, vector<1x1x16x8xbf16>
    %79 = vector.shape_cast %78 : vector<1x1x16x8xbf16> to vector<16x8xbf16>
    %80 = vector.shape_cast %77 : vector<16x8xbf16> to vector<1x1x16x8xbf16>
    tpu.vector_store %arg9[%c0_29, %c0_30, %c0_31, %c0_32], %80 {strides = array<i32>} : memref<1x1x16x8xbf16, #tpu.memory_space<vmem>>, vector<1x1x16x8xbf16>,
    return
  }
  func.func @transform_0(%arg0: i32, %arg1: i32, %arg2: i32) -> (i32, i32, i32, i32) {
    %c0_i32 = arith.constant 0 : i32
    %c0_i32_0 = arith.constant 0 : i32
    return %arg0, %arg1, %arg2, %c0_i32 : i32, i32, i32, i32
  }
  func.func @transform_1(%arg0: i32, %arg1: i32, %arg2: i32) -> (i32, i32, i32, i32) {
    %c0_i32 = arith.constant 0 : i32
    %c0_i32_0 = arith.constant 0 : i32
    %c0_i32_1 = arith.constant 0 : i32
    return %arg0, %arg1, %c0_i32, %c0_i32_0 : i32, i32, i32, i32
  }
  func.func @transform_2(%arg0: i32, %arg1: i32, %arg2: i32) -> (i32, i32, i32, i32) {
    %c0_i32 = arith.constant 0 : i32
    %c0_i32_0 = arith.constant 0 : i32
    %c0_i32_1 = arith.constant 0 : i32
    return %arg0, %arg1, %c0_i32, %c0_i32_0 : i32, i32, i32, i32
  }
  func.func @transform_3(%arg0: i32, %arg1: i32, %arg2: i32) -> (i32, i32, i32) {
    %c0_i32 = arith.constant 0 : i32
    %c0_i32_0 = arith.constant 0 : i32
    %c0_i32_1 = arith.constant 0 : i32
    return %arg1, %c0_i32, %c0_i32_0 : i32, i32, i32
  }
  func.func @transform_4(%arg0: i32, %arg1: i32, %arg2: i32) -> (i32, i32, i32) {
    %c0_i32 = arith.constant 0 : i32
    %c0_i32_0 = arith.constant 0 : i32
    %c0_i32_1 = arith.constant 0 : i32
    return %arg1, %c0_i32, %c0_i32_0 : i32, i32, i32
  }
  func.func @transform_5(%arg0: i32, %arg1: i32, %arg2: i32) -> (i32, i32, i32) {
    %c0_i32 = arith.constant 0 : i32
    %c0_i32_0 = arith.constant 0 : i32
    %c0_i32_1 = arith.constant 0 : i32
    return %arg1, %c0_i32, %c0_i32_0 : i32, i32, i32
  }
  func.func @transform_6(%arg0: i32, %arg1: i32, %arg2: i32) -> (i32, i32, i32, i32) {
    %c0_i32 = arith.constant 0 : i32
    %c0_i32_0 = arith.constant 0 : i32
    return %arg0, %arg1, %arg2, %c0_i32 : i32, i32, i32, i32
  }
}

</mosaic_0001>

<llo_original>
// kernel: tpu_custom_call.1
$region0: #{tpu_custom_call.1}
  #allocation0 [shape = 'u32[]', space=smem, size = 0x4, offset = 0x4, fixed_abs, tag = 'smem constant byte address 0x4 - core index']
  #allocation1 [shape = 'u32[144,128]{1,0:T(1,128)}', space=vmem, size = 0x12000, scoped, tag = 'internal scratch']
  %s0 = inlined_call_operand.vmem [shape: bf16[1,2,16,8], index: 0, kind: input, shape index: {}]
  %s1 = inlined_call_operand.vmem [shape: bf16[1,2,16,8], index: 1, kind: input, shape index: {}]
  %s2 = inlined_call_operand.vmem [shape: bf16[1,2,16,8], index: 2, kind: input, shape index: {}]
  %s3 = inlined_call_operand.vmem [shape: bf16[2,32,8], index: 3, kind: input, shape index: {}]
  %s4 = inlined_call_operand.vmem [shape: f32[2,1,8], index: 4, kind: input, shape index: {}]
  %s5 = inlined_call_operand.vmem [shape: f32[2,1,8], index: 5, kind: input, shape index: {}]
  %s6 = inlined_call_operand.vmem [shape: bf16[1,2,16,8], index: 6, kind: output, shape index: {}]
  %s7 = sld [smem:[#allocation0]]
  $region57: #{tpu_custom_call.1} parent=0
    _
  %s9 = ssub.s32 1, %s7
  %s10 = scalar_select 0, %s9, %s7
  loop: start=0, step=1, limit=4
  $region2: #{tpu_custom_call.1} parent=0 // loop_pre_header
    _
  $region3: #{tpu_custom_call.1} parent=0 // loop_header
    %s12 = sphi 0, %s16
    %p13 = scmp.ge.s32.totalorder %s12, 4
    %s19 = sphi 0, %s38
    %s20 = sphi 0, %s34
    %s21 = sphi 0, %s30
    %s22 = sphi 0, %s19
    %s23 = sphi 0, %s20
    %s24 = sphi 0, %s21
    %s25 = sphi 0, %s22
    %s26 = sphi 0, %s23
    %s27 = sphi 0, %s24
    %s45 = sphi 0, %s47
    %s48 = sphi 0, %s45
    %s49 = sphi 0, %s48
    %s65 = sphi 0, %s49
    %s73 = sphi 0, %s75
    %s76 = sphi 0, %s73
    %s77 = sphi 0, %s76
    %s93 = sphi 0, %s77
    %s101 = sphi 0, %s103
    %s104 = sphi 0, %s101
    %s105 = sphi 0, %s104
    %s121 = sphi 0, %s105
    %s127 = sphi 0, %s129
    %s130 = sphi 0, %s127
    %s131 = sphi 0, %s130
    %s147 = sphi 0, %s131
    %s153 = sphi 0, %s155
    %s156 = sphi 0, %s153
    %s157 = sphi 0, %s156
    %s173 = sphi 0, %s157
    %s179 = sphi 0, %s181
    %s182 = sphi 0, %s179
    %s183 = sphi 0, %s182
    %s199 = sphi 0, %s183
    %s209 = sphi 0, %s211
    %s212 = sphi 0, %s209
    %s213 = sphi 0, %s212
    %s229 = sphi 0, %s213
  $region4: #{tpu_custom_call.1} parent=0 // loop_header_branch
    %15 = sbr.rel (%p13) target = $region8
  $region5: #{tpu_custom_call.1} parent=0 // loop_body
    %s17 = ssub.s32 %s12, 1
    %s18 = ssub.s32 %s12, 2
    %s28 = sadd.s32 1, %s21
    %p29 = scmp.ge.s32.totalorder %s28, 1
    %s30 = scalar_select %p29, 0, %s28
    %s31 = sadd.s32 1, %s20
    %s32 = scalar_select %p29, %s31, %s20
    %p33 = scmp.ge.s32.totalorder %s32, 2
    %s34 = scalar_select %p33, 0, %s32
    %s35 = sadd.s32 1, %s19
    %s36 = scalar_select %p33, %s35, %s19
    %p37 = scmp.ge.s32.totalorder %s36, 1
    %s38 = scalar_select %p37, 0, %s36
    %s39 = ssub.s32 %s19, %s38
    %s40 = ssub.s32 %s20, %s34
    %s41 = sor.u32 %s39, %s40
    %s42 = ssub.s32 %s21, %s30
    %s43 = sor.u32 %s41, %s42
    %p44 = scmp.eq.s32.totalorder %s43, 0
    %s46 = sadd.s32 %s45, 1
    %s47 = scalar_select %p44, %s45, %s46
    %p50 = pneg %p44
    %p51 = scmp.eq.s32.totalorder %s12, 1
    %p52 = por %p50, %p51
    %p53 = scmp.ne.s32.totalorder %s45, %s48
    %p54 = scmp.eq.s32.totalorder %s12, 0
    %p55 = por %p53, %p54
    %p56 = scmp.ne.s32.totalorder %s45, %s48
    %p57 = scmp.eq.s32.totalorder %s17, 1
    %p58 = por %p56, %p57
    %p59 = scmp.ne.s32.totalorder %s48, %s49
    %p60 = scmp.eq.s32.totalorder %s17, 0
    %p61 = por %p59, %p60
    %p62 = scmp.ne.s32.totalorder %s48, %s49
    %p63 = scmp.eq.s32.totalorder %s18, 1
    %p64 = por %p62, %p63
    %p66 = scmp.ne.s32.totalorder %s49, %s65
    %p67 = scmp.eq.s32.totalorder %s18, 0
    %p68 = por %p66, %p67
    %s69 = ssub.s32 %s19, %s38
    %s70 = ssub.s32 %s20, %s34
    %s71 = sor.u32 %s69, %s70
    %p72 = scmp.eq.s32.totalorder %s71, 0
    %s74 = sadd.s32 %s73, 1
    %s75 = scalar_select %p72, %s73, %s74
    %p78 = pneg %p72
    %p79 = scmp.eq.s32.totalorder %s12, 1
    %p80 = por %p78, %p79
    %p81 = scmp.ne.s32.totalorder %s73, %s76
    %p82 = scmp.eq.s32.totalorder %s12, 0
    %p83 = por %p81, %p82
    %p84 = scmp.ne.s32.totalorder %s73, %s76
    %p85 = scmp.eq.s32.totalorder %s17, 1
    %p86 = por %p84, %p85
    %p87 = scmp.ne.s32.totalorder %s76, %s77
    %p88 = scmp.eq.s32.totalorder %s17, 0
    %p89 = por %p87, %p88
    %p90 = scmp.ne.s32.totalorder %s76, %s77
    %p91 = scmp.eq.s32.totalorder %s18, 1
    %p92 = por %p90, %p91
    %p94 = scmp.ne.s32.totalorder %s77, %s93
    %p95 = scmp.eq.s32.totalorder %s18, 0
    %p96 = por %p94, %p95
    %s97 = ssub.s32 %s19, %s38
    %s98 = ssub.s32 %s20, %s34
    %s99 = sor.u32 %s97, %s98
    %p100 = scmp.eq.s32.totalorder %s99, 0
    %s102 = sadd.s32 %s101, 1
    %s103 = scalar_select %p100, %s101, %s102
    %p106 = pneg %p100
    %p107 = scmp.eq.s32.totalorder %s12, 1
    %p108 = por %p106, %p107
    %p109 = scmp.ne.s32.totalorder %s101, %s104
    %p110 = scmp.eq.s32.totalorder %s12, 0
    %p111 = por %p109, %p110
    %p112 = scmp.ne.s32.totalorder %s101, %s104
    %p113 = scmp.eq.s32.totalorder %s17, 1
    %p114 = por %p112, %p113
    %p115 = scmp.ne.s32.totalorder %s104, %s105
    %p116 = scmp.eq.s32.totalorder %s17, 0
    %p117 = por %p115, %p116
    %p118 = scmp.ne.s32.totalorder %s104, %s105
    %p119 = scmp.eq.s32.totalorder %s18, 1
    %p120 = por %p118, %p119
    %p122 = scmp.ne.s32.totalorder %s105, %s121
    %p123 = scmp.eq.s32.totalorder %s18, 0
    %p124 = por %p122, %p123
    %s125 = ssub.s32 %s20, %s34
    %p126 = scmp.eq.s32.totalorder %s125, 0
    %s128 = sadd.s32 %s127, 1
    %s129 = scalar_select %p126, %s127, %s128
    %p132 = pneg %p126
    %p133 = scmp.eq.s32.totalorder %s12, 1
    %p134 = por %p132, %p133
    %p135 = scmp.ne.s32.totalorder %s127, %s130
    %p136 = scmp.eq.s32.totalorder %s12, 0
    %p137 = por %p135, %p136
    %p138 = scmp.ne.s32.totalorder %s127, %s130
    %p139 = scmp.eq.s32.totalorder %s17, 1
    %p140 = por %p138, %p139
    %p141 = scmp.ne.s32.totalorder %s130, %s131
    %p142 = scmp.eq.s32.totalorder %s17, 0
    %p143 = por %p141, %p142
    %p144 = scmp.ne.s32.totalorder %s130, %s131
    %p145 = scmp.eq.s32.totalorder %s18, 1
    %p146 = por %p144, %p145
    %p148 = scmp.ne.s32.totalorder %s131, %s147
    %p149 = scmp.eq.s32.totalorder %s18, 0
    %p150 = por %p148, %p149
    %s151 = ssub.s32 %s20, %s34
    %p152 = scmp.eq.s32.totalorder %s151, 0
    %s154 = sadd.s32 %s153, 1
    %s155 = scalar_select %p152, %s153, %s154
    %p158 = pneg %p152
    %p159 = scmp.eq.s32.totalorder %s12, 1
    %p160 = por %p158, %p159
    %p161 = scmp.ne.s32.totalorder %s153, %s156
    %p162 = scmp.eq.s32.totalorder %s12, 0
    %p163 = por %p161, %p162
    %p164 = scmp.ne.s32.totalorder %s153, %s156
    %p165 = scmp.eq.s32.totalorder %s17, 1
    %p166 = por %p164, %p165
    %p167 = scmp.ne.s32.totalorder %s156, %s157
    %p168 = scmp.eq.s32.totalorder %s17, 0
    %p169 = por %p167, %p168
    %p170 = scmp.ne.s32.totalorder %s156, %s157
    %p171 = scmp.eq.s32.totalorder %s18, 1
    %p172 = por %p170, %p171
    %p174 = scmp.ne.s32.totalorder %s157, %s173
    %p175 = scmp.eq.s32.totalorder %s18, 0
    %p176 = por %p174, %p175
    %s177 = ssub.s32 %s20, %s34
    %p178 = scmp.eq.s32.totalorder %s177, 0
    %s180 = sadd.s32 %s179, 1
    %s181 = scalar_select %p178, %s179, %s180
    %p184 = pneg %p178
    %p185 = scmp.eq.s32.totalorder %s12, 1
    %p186 = por %p184, %p185
    %p187 = scmp.ne.s32.totalorder %s179, %s182
    %p188 = scmp.eq.s32.totalorder %s12, 0
    %p189 = por %p187, %p188
    %p190 = scmp.ne.s32.totalorder %s179, %s182
    %p191 = scmp.eq.s32.totalorder %s17, 1
    %p192 = por %p190, %p191
    %p193 = scmp.ne.s32.totalorder %s182, %s183
    %p194 = scmp.eq.s32.totalorder %s17, 0
    %p195 = por %p193, %p194
    %p196 = scmp.ne.s32.totalorder %s182, %s183
    %p197 = scmp.eq.s32.totalorder %s18, 1
    %p198 = por %p196, %p197
    %p200 = scmp.ne.s32.totalorder %s183, %s199
    %p201 = scmp.eq.s32.totalorder %s18, 0
    %p202 = por %p200, %p201
    %s203 = ssub.s32 %s19, %s38
    %s204 = ssub.s32 %s20, %s34
    %s205 = sor.u32 %s203, %s204
    %s206 = ssub.s32 %s21, %s30
    %s207 = sor.u32 %s205, %s206
    %p208 = scmp.eq.s32.totalorder %s207, 0
    %s210 = sadd.s32 %s209, 1
    %s211 = scalar_select %p208, %s209, %s210
    %p214 = pneg %p208
    %p215 = scmp.eq.s32.totalorder %s12, 1
    %p216 = por %p214, %p215
    %p217 = scmp.ne.s32.totalorder %s209, %s212
    %p218 = scmp.eq.s32.totalorder %s12, 0
    %p219 = por %p217, %p218
    %p220 = scmp.ne.s32.totalorder %s209, %s212
    %p221 = scmp.eq.s32.totalorder %s17, 1
    %p222 = por %p220, %p221
    %p223 = scmp.ne.s32.totalorder %s212, %s213
    %p224 = scmp.eq.s32.totalorder %s17, 0
    %p225 = por %p223, %p224
    %p226 = scmp.ne.s32.totalorder %s212, %s213
    %p227 = scmp.eq.s32.totalorder %s18, 1
    %p228 = por %p226, %p227
    %p230 = scmp.ne.s32.totalorder %s213, %s229
    %p231 = scmp.eq.s32.totalorder %s18, 0
    %p232 = por %p230, %p231
    %p233 = scmp.le.s32.totalorder 1, %s12
    %p234 = scmp.lt.s32.totalorder %s12, 3
    %p235 = pnand %p233, %p234
    %p236 = pneg %p235
    // Predicated region
    $region9: #{tpu_custom_call.1} parent=5 // pred_check
      _
    $region10: #{tpu_custom_call.1} parent=5 // pred_check_branch
      %238 = sbr.rel (%p235) target = $region12
    $region11: #{tpu_custom_call.1} parent=5 // pred_region
      %s239 = ssub.s32 %s12, 1
    $region12: #{tpu_custom_call.1} parent=5 // pred_fallthru
      _
    %p240 = scmp.lt.s32.totalorder %s12, 2
    // Predicated region
    $region13: #{tpu_custom_call.1} parent=5 // pred_check
      %p241 = pneg %p240
    $region14: #{tpu_custom_call.1} parent=5 // pred_check_branch
      %243 = sbr.rel (%p241) target = $region16
    $region15: #{tpu_custom_call.1} parent=5 // pred_region
      // Predicated region
      $region17: #{tpu_custom_call.1} parent=15 // pred_check
        %p244 = pneg %p55
      $region18: #{tpu_custom_call.1} parent=15 // pred_check_branch
        %246 = sbr.rel (%p244) target = $region20
      $region19: #{tpu_custom_call.1} parent=15 // pred_region
        %s247 = smul.u32 2, %s21
        %p248 = scmp.lt.s32.totalorder %s19, 0
        %s249 = scalar_select %p248, %s19, 0
        %p250 = scmp.lt.s32.totalorder %s20, 1
        %s251 = scalar_select %p250, %s20, 1
        %p252 = scmp.lt.s32.totalorder %s247, 1
        %s253 = scalar_select %p252, %s247, 1
        %s254 = smul.addr %s251, 2
        %s255 = sadd.s32 %s253, %s254
        %s256 = smul.addr %s249, 4
        %s257 = sadd.s32 %s255, %s256
        %s258 = smul.addr %s257, 4
        %s259 = scalar_lea.vmem %s0, %s258
        %s260 = smul.u32 2, %s21
      $region20: #{tpu_custom_call.1} parent=15 // pred_fallthru
        _
      // Predicated region
      $region21: #{tpu_custom_call.1} parent=15 // pred_check
        %p261 = pneg %p83
      $region22: #{tpu_custom_call.1} parent=15 // pred_check_branch
        %263 = sbr.rel (%p261) target = $region24
      $region23: #{tpu_custom_call.1} parent=15 // pred_region
        %p264 = scmp.lt.s32.totalorder %s19, 0
        %s265 = scalar_select %p264, %s19, 0
        %p266 = scmp.lt.s32.totalorder %s20, 1
        %s267 = scalar_select %p266, %s20, 1
        %s268 = smul.addr %s267, 2
        %s269 = smul.addr %s265, 4
        %s270 = sadd.s32 %s268, %s269
        %s271 = smul.addr %s270, 4
        %s272 = scalar_lea.vmem %s1, %s271
      $region24: #{tpu_custom_call.1} parent=15 // pred_fallthru
        _
      // Predicated region
      $region25: #{tpu_custom_call.1} parent=15 // pred_check
        %p273 = pneg %p111
      $region26: #{tpu_custom_call.1} parent=15 // pred_check_branch
        %275 = sbr.rel (%p273) target = $region28
      $region27: #{tpu_custom_call.1} parent=15 // pred_region
        %p276 = scmp.lt.s32.totalorder %s19, 0
        %s277 = scalar_select %p276, %s19, 0
        %p278 = scmp.lt.s32.totalorder %s20, 1
        %s279 = scalar_select %p278, %s20, 1
        %s280 = smul.addr %s279, 2
        %s281 = smul.addr %s277, 4
        %s282 = sadd.s32 %s280, %s281
        %s283 = smul.addr %s282, 4
        %s284 = scalar_lea.vmem %s2, %s283
      $region28: #{tpu_custom_call.1} parent=15 // pred_fallthru
        _
      // Predicated region
      $region29: #{tpu_custom_call.1} parent=15 // pred_check
        %p285 = pneg %p137
      $region30: #{tpu_custom_call.1} parent=15 // pred_check_branch
        %287 = sbr.rel (%p285) target = $region32
      $region31: #{tpu_custom_call.1} parent=15 // pred_region
        %p288 = scmp.lt.s32.totalorder %s20, 1
        %s289 = scalar_select %p288, %s20, 1
        %s290 = smul.addr %s289, 4
        %s291 = smul.addr %s290, 4
        %s292 = scalar_lea.vmem %s3, %s291
      $region32: #{tpu_custom_call.1} parent=15 // pred_fallthru
        _
      // Predicated region
      $region33: #{tpu_custom_call.1} parent=15 // pred_check
        %p293 = pneg %p163
      $region34: #{tpu_custom_call.1} parent=15 // pred_check_branch
        %295 = sbr.rel (%p293) target = $region36
      $region35: #{tpu_custom_call.1} parent=15 // pred_region
        %p296 = scmp.lt.s32.totalorder %s20, 1
        %s297 = scalar_select %p296, %s20, 1
        %s298 = scalar_lea.vmem %s4, %s297
      $region36: #{tpu_custom_call.1} parent=15 // pred_fallthru
        _
      // Predicated region
      $region37: #{tpu_custom_call.1} parent=15 // pred_check
        %p299 = pneg %p189
      $region38: #{tpu_custom_call.1} parent=15 // pred_check_branch
        %301 = sbr.rel (%p299) target = $region40
      $region39: #{tpu_custom_call.1} parent=15 // pred_region
        %p302 = scmp.lt.s32.totalorder %s20, 1
        %s303 = scalar_select %p302, %s20, 1
        %s304 = scalar_lea.vmem %s5, %s303
      $region40: #{tpu_custom_call.1} parent=15 // pred_fallthru
        _
    $region16: #{tpu_custom_call.1} parent=5 // pred_fallthru
      _
    %p305 = scmp.le.s32.totalorder 1, %s12
    %p306 = scmp.lt.s32.totalorder %s12, 3
    %p307 = pnand %p305, %p306
    %p308 = pneg %p307
    // Predicated region
    $region41: #{tpu_custom_call.1} parent=5 // pred_check
      _
    $region42: #{tpu_custom_call.1} parent=5 // pred_check_branch
      %310 = sbr.rel (%p307) target = $region44
    $region43: #{tpu_custom_call.1} parent=5 // pred_region
      %s311 = ssub.s32 %s12, 1
      %s312 = smul.u32 2, %s24
      %p313 = scmp.lt.s32.totalorder %s22, 0
      %s314 = scalar_select %p313, %s22, 0
      %p315 = scmp.lt.s32.totalorder %s23, 1
      %s316 = scalar_select %p315, %s23, 1
      %p317 = scmp.lt.s32.totalorder %s312, 1
      %s318 = scalar_select %p317, %s312, 1
      %s319 = smul.addr %s316, 2
      %s320 = sadd.s32 %s318, %s319
      %s321 = smul.addr %s314, 4
      %s322 = sadd.s32 %s320, %s321
      %s323 = smul.addr %s322, 4
      %s324 = scalar_lea.vmem %s0, %s323
      %p325 = pneg %p61
      %p326 = pneg %p58
      %p327 = scmp.lt.s32.totalorder %s22, 0
      %s328 = scalar_select %p327, %s22, 0
      %p329 = scmp.lt.s32.totalorder %s23, 1
      %s330 = scalar_select %p329, %s23, 1
      %s331 = smul.addr %s330, 2
      %s332 = smul.addr %s328, 4
      %s333 = sadd.s32 %s331, %s332
      %s334 = smul.addr %s333, 4
      %s335 = scalar_lea.vmem %s1, %s334
      %p336 = pneg %p89
      %p337 = pneg %p86
      %p338 = scmp.lt.s32.totalorder %s22, 0
      %s339 = scalar_select %p338, %s22, 0
      %p340 = scmp.lt.s32.totalorder %s23, 1
      %s341 = scalar_select %p340, %s23, 1
      %s342 = smul.addr %s341, 2
      %s343 = smul.addr %s339, 4
      %s344 = sadd.s32 %s342, %s343
      %s345 = smul.addr %s344, 4
      %s346 = scalar_lea.vmem %s2, %s345
      %p347 = pneg %p117
      %p348 = pneg %p114
      %p349 = scmp.lt.s32.totalorder %s23, 1
      %s350 = scalar_select %p349, %s23, 1
      %s351 = smul.addr %s350, 4
      %s352 = smul.addr %s351, 4
      %s353 = scalar_lea.vmem %s3, %s352
      %p354 = pneg %p143
      %p355 = pneg %p140
      %p356 = scmp.lt.s32.totalorder %s23, 1
      %s357 = scalar_select %p356, %s23, 1
      %s358 = scalar_lea.vmem %s4, %s357
      %p359 = pneg %p169
      %p360 = pneg %p166
      %p361 = scmp.lt.s32.totalorder %s23, 1
      %s362 = scalar_select %p361, %s23, 1
      %s363 = scalar_lea.vmem %s5, %s362
      %p364 = pneg %p195
      %p365 = pneg %p192
      %p366 = pneg %p225
      %p367 = pneg %p222
      %s368 = smul.u32 2, %s24
      %p369 = scmp.lt.s32.totalorder %s22, 0
      %s370 = scalar_select %p369, %s22, 0
      %p371 = scmp.lt.s32.totalorder %s23, 1
      %s372 = scalar_select %p371, %s23, 1
      %p373 = scmp.lt.s32.totalorder %s368, 1
      %s374 = scalar_select %p373, %s368, 1
      %s375 = smul.addr %s372, 2
      %s376 = sadd.s32 %s374, %s375
      %s377 = smul.addr %s370, 4
      %s378 = sadd.s32 %s376, %s377
      %s379 = smul.addr %s378, 4
      %s380 = scalar_lea.vmem %s6, %s379
      %s381 = smul.u32 2, %s24
      %p382 = scmp.lt.s32.totalorder %s22, 0
      %s383 = scalar_select %p382, %s22, 0
      %p384 = scmp.lt.s32.totalorder %s23, 1
      %s385 = scalar_select %p384, %s23, 1
      %p386 = scmp.lt.s32.totalorder %s381, 1
      %s387 = scalar_select %p386, %s381, 1
      %s388 = smul.addr %s385, 2
      %s389 = sadd.s32 %s387, %s388
      %s390 = smul.addr %s383, 4
      %s391 = sadd.s32 %s389, %s390
      %s392 = smul.addr %s391, 4
      %s393 = scalar_lea.vmem %s0, %s392
      %s394 = smul.u32 2, %s24
      %p395 = scmp.lt.s32.totalorder %s22, 0
      %s396 = scalar_select %p395, %s22, 0
      %p397 = scmp.lt.s32.totalorder %s23, 1
      %s398 = scalar_select %p397, %s23, 1
      %s399 = smul.addr %s398, 2
      %s400 = smul.addr %s396, 4
      %s401 = sadd.s32 %s399, %s400
      %s402 = smul.addr %s401, 4
      %s403 = scalar_lea.vmem %s1, %s402
      %p404 = scmp.lt.s32.totalorder %s22, 0
      %s405 = scalar_select %p404, %s22, 0
      %p406 = scmp.lt.s32.totalorder %s23, 1
      %s407 = scalar_select %p406, %s23, 1
      %s408 = smul.addr %s407, 2
      %s409 = smul.addr %s405, 4
      %s410 = sadd.s32 %s408, %s409
      %s411 = smul.addr %s410, 4
      %s412 = scalar_lea.vmem %s2, %s411
      %p413 = scmp.lt.s32.totalorder %s23, 1
      %s414 = scalar_select %p413, %s23, 1
      %s415 = smul.addr %s414, 4
      %s416 = smul.addr %s415, 4
      %s417 = scalar_lea.vmem %s3, %s416
      %p418 = scmp.lt.s32.totalorder %s23, 1
      %s419 = scalar_select %p418, %s23, 1
      %s420 = scalar_lea.vmem %s4, %s419
      %p421 = scmp.lt.s32.totalorder %s23, 1
      %s422 = scalar_select %p421, %s23, 1
      %s423 = scalar_lea.vmem %s5, %s422
      %s424 = smul.u32 2, %s24
      %p425 = scmp.lt.s32.totalorder %s22, 0
      %s426 = scalar_select %p425, %s22, 0
      %p427 = scmp.lt.s32.totalorder %s23, 1
      %s428 = scalar_select %p427, %s23, 1
      %p429 = scmp.lt.s32.totalorder %s424, 1
      %s430 = scalar_select %p429, %s424, 1
      %s431 = smul.addr %s428, 2
      %s432 = sadd.s32 %s430, %s431
      %s433 = smul.addr %s426, 4
      %s434 = sadd.s32 %s432, %s433
      %s435 = smul.addr %s434, 4
      %s436 = scalar_lea.vmem %s6, %s435
      %s437 = smul.u32 2, %s24
      %v439 = vld [vmem:[%s393] sm:$0xf]
      %v440 = vld [vmem:[%s393 + $0x4] sm:$0xf]
      %v441 = vunpack.c.l.bf16 %v439
      %v442 = vunpack.c.l.bf16 %v440
      %v443 = vmul.f32 %v441, 0.35355338
      %v444 = vmul.f32 %v442, 0.35355338
      %v445 = vld [vmem:[%s420] sm:$0x1]
      %v447 = vlaneseq
      %v448 = vshrl.u32 %v447, 7
      %v449 = vsub.s32 0, %v448
      %v450 = vrot.slane %v445, %v449
      %v452 = vadd.f32 %v443, %v450
      %v453 = vadd.f32 %v444, %v450
      %v454 = vpack.c.bf16 %v453, %v452
      %v455 = vld [vmem:[%s423] sm:$0x1]
      %v457 = vlaneseq
      %v458 = vshrl.u32 %v457, 7
      %v459 = vsub.s32 0, %v458
      %v460 = vrot.slane %v455, %v459
      %v462 = vadd.f32 %v443, %v460
      %v463 = vadd.f32 %v444, %v460
      %v464 = vpack.c.bf16 %v463, %v462
      %v465 = vld [vmem:[%s403] sm:$0xf]
      %v466 = vld [vmem:[%s403 + $0x4] sm:$0xf]
      %s467 = sadd.s32 %s24, 1
      %s468 = smul.u32 %s467, 16
      %s469 = ssub.s32 16, %s468
      %s470 = sshra.s32 %s469, 3
      %s471 = sand.u32 %s469, 7
      %s472 = smul.addr %s470, 4
      %s473 = scalar_lea.vmem %s417, %s472
      %v474 = vld [vmem:[%s473] sm:$0xf]
      %v475 = vld [vmem:[%s473 + $0x4] sm:$0xf]
      %v476 = vld [vmem:[%s473 + $0x8] sm:$0xf]
      %v477 = vld [vmem:[%s473 + $0xc] sm:$0xf]
      %v482 = vunpack.c.l.b16 %v474
      %v483 = vunpack.c.l.b16 %v475
      %v484 = vunpack.c.l.b16 %v476
      %v485 = vunpack.c.l.b16 %v477
      %v486 = vpack.c.b16 %v483, %v482
      %v487 = vpack.c.b16 %v485, %v484
      %vm488 = vcmask 64512
      %v490 = vsel %vm488, %v464, 0
      %v493 = vsel %vm488, %v486, 0
      %v496 = vsel %vm488, %v487, 0
      %498 = vmatprep.subr.bf16.mxu0 0
      %499 = vmatpush1.bf16.xpose.msra.mxu0 0
      %500 = vmatprep.subr.bf16.mxu0 0
      %501 = vmatpush1.bf16.xpose.msra.mxu0 0
      %502 = vmatprep.subr.bf16.mxu0 0
      %503 = vmatpush1.bf16.xpose.msra.mxu0 0
      %504 = vmatprep.subr.bf16.mxu0 0
      %505 = vmatpush1.bf16.xpose.msra.mxu0 0
      %506 = vmatprep.subr.bf16.mxu0 0
      %507 = vmatpush1.bf16.xpose.msra.mxu0 0
      %508 = vmatprep.subr.bf16.mxu0 0
      %509 = vmatpush1.bf16.xpose.msra.mxu0 0
      %510 = vmatprep.subr.bf16.mxu0 0
      %511 = vmatpush1.bf16.xpose.msra.mxu0 %v496
      %512 = vmatprep.subr.bf16.mxu0 0
      %513 = vmatpush1.bf16.xpose.msra.mxu0 %v493
      %514 = vmatprep.subr.bf16.mxu0 0
      %515 = vmatpush2.bf16.xpose.msra.mxu0 0
      %516 = vmatprep.subr.bf16.mxu0 0
      %517 = vmatpush2.bf16.xpose.msra.mxu0 0
      %518 = vmatprep.subr.bf16.mxu0 0
      %519 = vmatpush2.bf16.xpose.msra.mxu0 0
      %520 = vmatprep.subr.bf16.mxu0 0
      %521 = vmatpush2.bf16.xpose.msra.mxu0 0
      %522 = vmatprep.subr.bf16.mxu0 0
      %523 = vmatpush2.bf16.xpose.msra.mxu0 0
      %524 = vmatprep.subr.bf16.mxu0 0
      %525 = vmatpush2.bf16.xpose.msra.mxu0 0
      %526 = vmatprep.subr.bf16.mxu0 0
      %527 = vmatpush2.bf16.xpose.msra.mxu0 0
      %528 = vmatprep.subr.bf16.mxu0 0
      %529 = vmatpush2.bf16.xpose.msra.mxu0 0
      %530 = vmatprep.mubr.bf16.mxu0 0
      %531 = vmatmul.mubr.bf16.gmra.mxu0 %v490
      %v532 = vpop.f32.mrf.mxu0
      %v533 = vadd.f32 0.0, %v532
      %v534 = vpop.f32.mrf.mxu0
      %v535 = vpop.f32.mrf.mxu0
      %v536 = vadd.f32 0.0, %v535
      %v537 = vpop.f32.mrf.mxu0
      %538 = vdwg.mxu0
      %v539 = vlaneseq
      %v540 = vshrl.u32 %v539, 7
      %v541 = vadd.s32 %v540, 8
      %v542 = vsub.s32 15, %v540
      %v543 = vsub.s32 15, %v541
      %v544 = vand.u32 %v542, 1
      %v545 = vand.u32 %v543, 1
      %vm546 = vcmp.ne.s32.totalorder %v544, 0
      %vm547 = vcmp.ne.s32.totalorder %v545, 0
      %550 = vrot.lane.b32.xlu0 %v533, 127
      %v551 = vpop.permute.xlu0 %550
      %552 = vrot.lane.b32.xlu0 %v536, 127
      %v553 = vpop.permute.xlu0 %552
      %556 = vrot.lane.b32.xlu0 %v533, 31
      %v557 = vpop.permute.xlu0 %556
      %558 = vrot.lane.b32.xlu0 %v536, 31
      %v559 = vpop.permute.xlu0 %558
      %vm562 = vcmask 252928
      %v563 = vsel %vm562, %v551, %v557
      %v564 = vsel %vm562, %v553, %v559
      %v565 = vsel %vm546, %v563, %v533
      %v566 = vsel %vm547, %v564, %v536
      %v567 = vand.u32 %v542, 2
      %v568 = vand.u32 %v543, 2
      %vm569 = vcmp.ne.s32.totalorder %v567, 0
      %vm570 = vcmp.ne.s32.totalorder %v568, 0
      %573 = vrot.lane.b32.xlu0 %v565, 126
      %v574 = vpop.permute.xlu0 %573
      %575 = vrot.lane.b32.xlu0 %v566, 126
      %v576 = vpop.permute.xlu0 %575
      %579 = vrot.lane.b32.xlu0 %v565, 30
      %v580 = vpop.permute.xlu0 %579
      %581 = vrot.lane.b32.xlu0 %v566, 30
      %v582 = vpop.permute.xlu0 %581
      %vm585 = vcmask 244736
      %v586 = vsel %vm585, %v574, %v580
      %v587 = vsel %vm585, %v576, %v582
      %v588 = vsel %vm569, %v586, %v565
      %v589 = vsel %vm570, %v587, %v566
      %v590 = vand.u32 %v542, 4
      %v591 = vand.u32 %v543, 4
      %vm592 = vcmp.ne.s32.totalorder %v590, 0
      %vm593 = vcmp.ne.s32.totalorder %v591, 0
      %596 = vrot.lane.b32.xlu0 %v588, 124
      %v597 = vpop.permute.xlu0 %596
      %598 = vrot.lane.b32.xlu0 %v589, 124
      %v599 = vpop.permute.xlu0 %598
      %602 = vrot.lane.b32.xlu0 %v588, 28
      %v603 = vpop.permute.xlu0 %602
      %604 = vrot.lane.b32.xlu0 %v589, 28
      %v605 = vpop.permute.xlu0 %604
      %vm608 = vcmask 228352
      %v609 = vsel %vm608, %v597, %v603
      %v610 = vsel %vm608, %v599, %v605
      %v611 = vsel %vm592, %v609, %v588
      %v612 = vsel %vm593, %v610, %v589
      %v613 = vand.u32 %v542, 8
      %v614 = vand.u32 %v543, 8
      %vm615 = vcmp.ne.s32.totalorder %v613, 0
      %vm616 = vcmp.ne.s32.totalorder %v614, 0
      %619 = vrot.lane.b32.xlu0 %v611, 120
      %v620 = vpop.permute.xlu0 %619
      %621 = vrot.lane.b32.xlu0 %v612, 120
      %v622 = vpop.permute.xlu0 %621
      %625 = vrot.lane.b32.xlu0 %v611, 24
      %v626 = vpop.permute.xlu0 %625
      %627 = vrot.lane.b32.xlu0 %v612, 24
      %v628 = vpop.permute.xlu0 %627
      %vm631 = vcmask 195584
      %v632 = vsel %vm631, %v620, %v626
      %v633 = vsel %vm631, %v622, %v628
      %v634 = vsel %vm615, %v632, %v611
      %v635 = vsel %vm616, %v633, %v612
      %v638 = vunpack.c.l.b16 %v465
      %v639 = vunpack.c.l.b16 %v466
      %v640 = vpack.c.b16 %v639, %v638
      %v642 = vsel %vm488, %v454, 0
      %v645 = vsel %vm488, %v640, 0
      %647 = vmatprep.subr.bf16.mxu0 0
      %648 = vmatpush1.bf16.xpose.msra.mxu0 0
      %649 = vmatprep.subr.bf16.mxu0 0
      %650 = vmatpush1.bf16.xpose.msra.mxu0 0
      %651 = vmatprep.subr.bf16.mxu0 0
      %652 = vmatpush1.bf16.xpose.msra.mxu0 0
      %653 = vmatprep.subr.bf16.mxu0 0
      %654 = vmatpush1.bf16.xpose.msra.mxu0 0
      %655 = vmatprep.subr.bf16.mxu0 0
      %656 = vmatpush1.bf16.xpose.msra.mxu0 0
      %657 = vmatprep.subr.bf16.mxu0 0
      %658 = vmatpush1.bf16.xpose.msra.mxu0 0
      %659 = vmatprep.subr.bf16.mxu0 0
      %660 = vmatpush1.bf16.xpose.msra.mxu0 0
      %661 = vmatprep.subr.bf16.mxu0 0
      %662 = vmatpush1.bf16.xpose.msra.mxu0 %v645
      %663 = vmatprep.subr.bf16.mxu0 0
      %664 = vmatpush2.bf16.xpose.msra.mxu0 0
      %665 = vmatprep.subr.bf16.mxu0 0
      %666 = vmatpush2.bf16.xpose.msra.mxu0 0
      %667 = vmatprep.subr.bf16.mxu0 0
      %668 = vmatpush2.bf16.xpose.msra.mxu0 0
      %669 = vmatprep.subr.bf16.mxu0 0
      %670 = vmatpush2.bf16.xpose.msra.mxu0 0
      %671 = vmatprep.subr.bf16.mxu0 0
      %672 = vmatpush2.bf16.xpose.msra.mxu0 0
      %673 = vmatprep.subr.bf16.mxu0 0
      %674 = vmatpush2.bf16.xpose.msra.mxu0 0
      %675 = vmatprep.subr.bf16.mxu0 0
      %676 = vmatpush2.bf16.xpose.msra.mxu0 0
      %677 = vmatprep.subr.bf16.mxu0 0
      %678 = vmatpush2.bf16.xpose.msra.mxu0 0
      %679 = vmatprep.mubr.bf16.mxu0 0
      %680 = vmatmul.mubr.bf16.gmra.mxu0 %v642
      %v681 = vpop.f32.mrf.mxu0
      %v682 = vadd.f32 %v634, %v681
      %v683 = vpop.f32.mrf.mxu0
      %v684 = vpop.f32.mrf.mxu0
      %v685 = vadd.f32 %v635, %v684
      %v686 = vpop.f32.mrf.mxu0
      %687 = vdwg.mxu0
      %vm688 = vcmask 130048
      %v689 = vsel %vm688, %v682, -inf
      %690 = vmax.xlane.f32.xlu0 %v689
      %v691 = vpop.xlane.xlu0 %690
      %v692 = vsel %vm688, %v685, -inf
      %693 = vmax.xlane.f32.xlu0 %v692
      %v694 = vpop.xlane.xlu0 %693
      %v695 = vsub.f32 %v682, %v691
      %v696 = vsub.f32 %v685, %v694
      %v697 = vmul.f32 %v695, 1.442695
      %v698 = vpow.pop %v697
      %v699 = vmul.f32 %v696, 1.442695
      %v700 = vpow.pop %v699
      %v701 = vsel %vm688, %v698, 0.0
      %702 = vadd.xlane.f32.xlu0 %v701
      %v703 = vpop.xlane.xlu0 %702
      %v704 = vsel %vm688, %v700, 0.0
      %705 = vadd.xlane.f32.xlu0 %v704
      %v706 = vpop.xlane.xlu0 %705
      %v707 = vrcp.pop %v703
      %v708 = vrcp.pop %v706
      %v709 = vmul.f32 %v698, %v707
      %v710 = vmul.f32 %v700, %v708
      %v711 = vpack.c.bf16 %v710, %v709
      %v712 = vld [vmem:[%s412] sm:$0xf]
      %v713 = vld [vmem:[%s412 + $0x4] sm:$0xf]
      %v716 = vunpack.c.l.b16 %v712
      %v717 = vunpack.c.l.b16 %v713
      %v718 = vpack.c.b16 %v717, %v716
      %v721 = vsel %vm688, %v711, 0
      %723 = vmatprep.subr.bf16.mxu0 0
      %724 = vmatpush1.bf16.msra.mxu0 0
      %725 = vmatprep.subr.bf16.mxu0 0
      %726 = vmatpush1.bf16.msra.mxu0 0
      %727 = vmatprep.subr.bf16.mxu0 0
      %728 = vmatpush1.bf16.msra.mxu0 0
      %729 = vmatprep.subr.bf16.mxu0 0
      %730 = vmatpush1.bf16.msra.mxu0 0
      %731 = vmatprep.subr.bf16.mxu0 0
      %732 = vmatpush1.bf16.msra.mxu0 0
      %733 = vmatprep.subr.bf16.mxu0 0
      %734 = vmatpush1.bf16.msra.mxu0 0
      %735 = vmatprep.subr.bf16.mxu0 0
      %736 = vmatpush1.bf16.msra.mxu0 0
      %737 = vmatprep.subr.bf16.mxu0 0
      %738 = vmatpush1.bf16.msra.mxu0 %v718
      %739 = vmatprep.subr.bf16.mxu0 0
      %740 = vmatpush2.bf16.msra.mxu0 0
      %741 = vmatprep.subr.bf16.mxu0 0
      %742 = vmatpush2.bf16.msra.mxu0 0
      %743 = vmatprep.subr.bf16.mxu0 0
      %744 = vmatpush2.bf16.msra.mxu0 0
      %745 = vmatprep.subr.bf16.mxu0 0
      %746 = vmatpush2.bf16.msra.mxu0 0
      %747 = vmatprep.subr.bf16.mxu0 0
      %748 = vmatpush2.bf16.msra.mxu0 0
      %749 = vmatprep.subr.bf16.mxu0 0
      %750 = vmatpush2.bf16.msra.mxu0 0
      %751 = vmatprep.subr.bf16.mxu0 0
      %752 = vmatpush2.bf16.msra.mxu0 0
      %753 = vmatprep.subr.bf16.mxu0 0
      %754 = vmatpush2.bf16.msra.mxu0 0
      %755 = vmatprep.mubr.bf16.mxu0 0
      %756 = vmatmul.mubr.bf16.gmra.mxu0 %v721
      %v757 = vpop.f32.mrf.mxu0
      %v758 = vadd.f32 0.0, %v757
      %v759 = vpop.f32.mrf.mxu0
      %v760 = vpop.f32.mrf.mxu0
      %v761 = vadd.f32 0.0, %v760
      %v762 = vpop.f32.mrf.mxu0
      %763 = vdwg.mxu0
      %v764 = vpack.c.bf16 %v761, %v758
      %v766 = vunpack.c.l.b16 %v764
      %v767 = vunpack.c.h.b16 %v764
      %v768 = vpack.c.b16 %v766, %v766
      %v769 = vpack.c.b16 %v767, %v767
      %vm772 = vcmask 60416
      %773 = vst.msk [vmem:[%s436] sm:$0xf] %vm772, %v768
      %774 = vst.msk [vmem:[%s436 + $0x4] sm:$0xf] %vm772, %v769
      %s775 = smul.u32 2, %s24
      %p776 = scmp.lt.s32.totalorder %s22, 0
      %s777 = scalar_select %p776, %s22, 0
      %p778 = scmp.lt.s32.totalorder %s23, 1
      %s779 = scalar_select %p778, %s23, 1
      %p780 = scmp.lt.s32.totalorder %s775, 1
      %s781 = scalar_select %p780, %s775, 1
      %s782 = smul.addr %s779, 2
      %s783 = sadd.s32 %s781, %s782
      %s784 = smul.addr %s777, 4
      %s785 = sadd.s32 %s783, %s784
      %s786 = smul.addr %s785, 4
      %s787 = scalar_lea.vmem %s6, %s786
      // Predicated region
      $region45: #{tpu_custom_call.1} parent=43 // pred_check
        %p788 = pneg %p222
      $region46: #{tpu_custom_call.1} parent=43 // pred_check_branch
        %790 = sbr.rel (%p788) target = $region48
      $region47: #{tpu_custom_call.1} parent=43 // pred_region
        %s791 = smul.u32 2, %s24
      $region48: #{tpu_custom_call.1} parent=43 // pred_fallthru
        _
    $region44: #{tpu_custom_call.1} parent=5 // pred_fallthru
      _
    %p792 = scmp.le.s32.totalorder 2, %s12
    // Predicated region
    $region49: #{tpu_custom_call.1} parent=5 // pred_check
      %p793 = pneg %p792
    $region50: #{tpu_custom_call.1} parent=5 // pred_check_branch
      %795 = sbr.rel (%p793) target = $region52
    $region51: #{tpu_custom_call.1} parent=5 // pred_region
      %s796 = ssub.s32 %s12, 2
      // Predicated region
      $region53: #{tpu_custom_call.1} parent=51 // pred_check
        %p797 = pneg %p228
      $region54: #{tpu_custom_call.1} parent=51 // pred_check_branch
        %799 = sbr.rel (%p797) target = $region56
      $region55: #{tpu_custom_call.1} parent=51 // pred_region
        %s800 = smul.u32 2, %s27
        %p801 = scmp.lt.s32.totalorder %s25, 0
        %s802 = scalar_select %p801, %s25, 0
        %p803 = scmp.lt.s32.totalorder %s26, 1
        %s804 = scalar_select %p803, %s26, 1
        %p805 = scmp.lt.s32.totalorder %s800, 1
        %s806 = scalar_select %p805, %s800, 1
        %s807 = smul.addr %s804, 2
        %s808 = sadd.s32 %s806, %s807
        %s809 = smul.addr %s802, 4
        %s810 = sadd.s32 %s808, %s809
        %s811 = smul.addr %s810, 4
        %s812 = scalar_lea.vmem %s6, %s811
      $region56: #{tpu_custom_call.1} parent=51 // pred_fallthru
        _
    $region52: #{tpu_custom_call.1} parent=5 // pred_fallthru
      _
  $region6: #{tpu_custom_call.1} parent=0 // loop_footer
    %s16 = sadd.s32 1, %s12
  $region7: #{tpu_custom_call.1} parent=0 // loop_footer_branch
    %11 = sbr.rel target = $region3
  $region8: #{tpu_custom_call.1} parent=0 // loop_exit
    _

</llo_original>
